<compile_context>
chip_gen: v7x
topology: tpu7x:2x2x1
jax: 0.10.0
libtpu: 0.0.40
codegen_flags: <defaults>
</compile_context>

<pallas_src>
import functools

import jax
import jax.numpy as jnp
from jax.experimental import pallas as pl
from jax.experimental.pallas import tpu as pltpu


def _round_up(x, m):
    return ((x + m - 1) // m) * m


def _gelu_erf(y):
    """Exact (erf) GELU via Abramowitz & Stegun 7.1.26 (|erf error| <= 1.5e-7).

    HF DeBERTa ContextPooler's default 'gelu' is the exact erf form; this polynomial
    uses only Mosaic-supported elementwise ops (abs/div/exp/where) and matches
    jax.nn.gelu(approximate=False) to far below bf16 matmul noise.  Kept in f32.
    """
    u = y * 0.7071067811865476            # y / sqrt(2)
    ua = jnp.abs(u)
    t = 1.0 / (1.0 + 0.3275911 * ua)
    poly = t * (0.254829592 + t * (-0.284496736 + t * (1.421413741
           + t * (-1.453152027 + t * 1.061405429))))
    erf_abs = 1.0 - poly * jnp.exp(-ua * ua)
    erf = jnp.where(u >= 0.0, erf_abs, -erf_abs)
    return 0.5 * y * (1.0 + erf)


def _pooler_kernel(x_ref, w_ref, b_ref, o_ref, *, activation):
    # Single full-K block per (i, j): one MXU matmul with f32 accumulation, then a
    # fused bias + activation epilogue (f32 throughout) and a lane-dense store.
    y = jnp.dot(x_ref[...], w_ref[...], preferred_element_type=jnp.float32)
    y = y + b_ref[...]
    if activation == "gelu":            # exact erf-GELU (HF ContextPooler default)
        y = _gelu_erf(y)
    elif activation == "gelu_tanh":     # tanh approximation, if ever wanted
        c = 0.7978845608028654          # sqrt(2/pi)
        y = 0.5 * y * (1.0 + jnp.tanh(c * (y + 0.044715 * y * y * y)))
    elif activation == "tanh":
        y = jnp.tanh(y)
    # else: identity
    o_ref[...] = y.astype(o_ref.dtype)


def _choose_tn(Np, Kp, tm, out_itemsize, budget_bytes=16 << 20):
    """Largest 128-multiple divisor of Np that fits a conservative VMEM budget,
    preferring an even N-tile count so v7x's two TensorCores get a balanced
    'parallel' split (costs one extra ~0.35us grid step on single-TC v5e/v6e)."""
    def vmem(tn):
        # double-buffered bf16 x/w blocks + f32 bias row + double-buffered out block
        return 2 * ((tm * Kp + Kp * tn) * 2 + tn * 4 + tm * tn * out_itemsize)

    divs = [d for d in range(128, Np + 1, 128) if Np % d == 0]
    fits = [d for d in divs if vmem(d) <= budget_bytes] or [divs[0]]
    even = [d for d in fits if (Np // d) % 2 == 0]
    return max(even) if even else max(fits)


def prepare_pooler_params(pooler_weight, pooler_bias):
    """One-time (model-load-time) prep of the frozen ContextPooler dense params.

    pooler_weight: [N, K] torch nn.Linear layout (out_features x in_features).
    pooler_bias:   [N].
    Returns (w_t [Kp, Np] bf16, bias [1, Np] f32, N, K) with Kp/Np padded to 128.
    Hoisted out of the per-forward path because the encoder & pooler are frozen.
    """
    N, K = pooler_weight.shape
    Kp, Np = _round_up(K, 128), _round_up(N, 128)
    w_t = pooler_weight.T.astype(jnp.bfloat16)
    if (Kp, Np) != (K, N):
        w_t = jnp.zeros((Kp, Np), jnp.bfloat16).at[:K, :N].set(w_t)
    bias = jnp.zeros((1, Np), jnp.float32).at[0, :N].set(pooler_bias.astype(jnp.float32))
    return w_t, bias, N, K


def _pooler_dense(cls_tokens, w_t, bias_row, N, K, *, activation="gelu"):
    """Fused act(cls @ W^T + b) on the MXU.

    cls_tokens: [B, K] activations (any float dtype).
    w_t:        [Kp, Np] bf16, pre-prepared (== torch weight.T, padded to 128).
    bias_row:   [1, Np] f32.
    """
    B, Kin = cls_tokens.shape
    assert Kin == K, (Kin, K)
    Kp, Np = w_t.shape
    out_dtype = cls_tokens.dtype
    out_itemsize = jnp.dtype(out_dtype).itemsize

    # M tiling: bf16 packs 16 rows per vreg -> round rows up to 16; a single M tile
    # covers typical SentenceModel batches (<= 256).
    if B <= 256:
        Mp = _round_up(B, 16)
        tm = Mp
    else:
        tm = 256
        Mp = _round_up(B, tm)

    tn = _choose_tn(Np, Kp, tm, out_itemsize)
    grid = (Mp // tm, Np // tn)

    # Per-call operand prep: only the small activation tile (weight was prepped once).
    xb = cls_tokens.astype(jnp.bfloat16)
    if (Mp, Kp) != (B, K):
        x = jnp.zeros((Mp, Kp), jnp.bfloat16).at[:B, :K].set(xb)
    else:
        x = xb

    # Honest (unpadded) cost hint for XLA's scheduler.
    cost = pl.CostEstimate(
        flops=2 * B * K * N,
        transcendentals=B * N,  # exp inside the erf epilogue
        bytes_accessed=int(B * K * 2 + K * N * 2 + N * 4 + B * N * out_itemsize),
    )

    kernel = functools.partial(_pooler_kernel, activation=activation)
    out = pl.pallas_call(
        kernel,
        out_shape=jax.ShapeDtypeStruct((Mp, Np), out_dtype),
        grid_spec=pltpu.PrefetchScalarGridSpec(
            num_scalar_prefetch=0,
            grid=grid,
            in_specs=[
                pl.BlockSpec((tm, Kp), lambda i, j: (i, 0)),   # full-K activation block
                pl.BlockSpec((Kp, tn), lambda i, j: (0, j)),   # full-K weight column block
                pl.BlockSpec((1, tn), lambda i, j: (0, j)),    # bias reused across M tiles
            ],
            out_specs=pl.BlockSpec((tm, tn), lambda i, j: (i, j)),
        ),
        compiler_params=pltpu.CompilerParams(
            dimension_semantics=("parallel", "parallel"),
        ),
        cost_estimate=cost,
    )(x, w_t, bias_row)

    if Mp != B:
        out = out[:B]
    if Np != N:
        out = out[:, :N]
    return out


def sentence_model_forward(last_hidden_state, pooler_params=None, *,
                           nli_id="DeBERTa", activation="gelu"):
    """Post-encoder part of SentenceModel.forward.

    last_hidden_state: [B, S, H] encoder output.
    pooler_params: output of prepare_pooler_params (DeBERTa branch only).
    """
    # TODO(synk): the frozen pretrained encoder (model.deberta / model.roberta /
    # model.model) is a full HF transformer and is not re-implemented as a Pallas kernel.
    if "DeBERTa" in nli_id:
        w_t, bias_row, N, K = pooler_params
        cls = last_hidden_state[:, 0, :]  # ContextPooler takes the CLS token
        return _pooler_dense(cls, w_t, bias_row, N, K, activation=activation)
    # roberta / other: pooled_output = last_hidden_state[:, 0]
    return last_hidden_state[:, 0, :]


if __name__ == "__main__":
    key = jax.random.PRNGKey(0)
    k_h, k_w, k_b = jax.random.split(key, 3)

    # Small shapes consistent with the module: [batch, seq, hidden] encoder output.
    batch, seq, hidden = 8, 16, 128
    last_hidden_state = jax.random.normal(k_h, (batch, seq, hidden), dtype=jnp.float32)

    # Pooler dense params (mimic PyTorch Linear uniform(-1/sqrt(fan_in), ...)), torch layout.
    bound = 1.0 / jnp.sqrt(jnp.float32(hidden))
    w = jax.random.uniform(k_w, (hidden, hidden), jnp.float32, -bound, bound)  # [out, in]
    b = jax.random.uniform(k_b, (hidden,), jnp.float32, -bound, bound)

    # One-time weight prep (frozen params) — hoisted out of the per-forward hot path.
    pooler_params = prepare_pooler_params(w, b)

    # DeBERTa branch: CLS -> fused Linear + exact erf-GELU Pallas kernel.
    out = sentence_model_forward(
        last_hidden_state, pooler_params, nli_id="DeBERTa-v3", activation="gelu"
    )
    out = jax.block_until_ready(out)

    # Reference: same bf16 operand rounding, f32 accumulation, exact erf-GELU.
    cls = last_hidden_state[:, 0, :]
    xb = cls.astype(jnp.bfloat16).astype(jnp.float32)
    wb = w.T.astype(jnp.bfloat16).astype(jnp.float32)
    y = xb @ wb + b[None, :]
    ref = jax.nn.gelu(y, approximate=False)
    assert out.shape == (batch, hidden), out.shape
    err = float(jnp.max(jnp.abs(out - ref)))
    assert jnp.allclose(out, ref, atol=2e-3, rtol=2e-3), err

    # Non-DeBERTa branch: pure CLS slice (no kernel needed).
    out_roberta = sentence_model_forward(last_hidden_state, nli_id="roberta-large-mnli")
    out_roberta = jax.block_until_ready(out_roberta)
    assert out_roberta.shape == (batch, hidden)
    assert jnp.allclose(out_roberta, cls)

    print("KERNEL_OK")
</pallas_src>

<mosaic_0001>
module attributes {stable_mosaic.version = 11 : i64} {
  func.func @_pooler_kernel(%arg0: i32, %arg1: i32, %arg2: memref<16x128xbf16, #tpu.memory_space<vmem>>, %arg3: memref<128x128xbf16, #tpu.memory_space<vmem>>, %arg4: memref<1x128xf32, #tpu.memory_space<vmem>>, %arg5: memref<16x128xf32, #tpu.memory_space<vmem>>) attributes {dimension_semantics = [#tpu.dimension_semantics<parallel>, #tpu.dimension_semantics<parallel>], iteration_bounds = array<i64: 1, 1>, scalar_prefetch = 0 : i64, scratch_operands = 0 : i64, tpu.core_type = #tpu.core_type<tc>, window_params = [{transform_indices = @transform_0, window_bounds = array<i64: 16, 128>}, {transform_indices = @transform_1, window_bounds = array<i64: 128, 128>}, {transform_indices = @transform_2, window_bounds = array<i64: 1, 128>}, {transform_indices = @transform_3, window_bounds = array<i64: 16, 128>}]} {
    %c0 = arith.constant 0 : index
    %c0_0 = arith.constant 0 : index
    %0 = vector.load %arg2[%c0, %c0_0] : memref<16x128xbf16, #tpu.memory_space<vmem>>, vector<16x128xbf16>
    %c0_1 = arith.constant 0 : index
    %c0_2 = arith.constant 0 : index
    %1 = vector.load %arg3[%c0_1, %c0_2] : memref<128x128xbf16, #tpu.memory_space<vmem>>, vector<128x128xbf16>
    %cst = arith.constant dense<0.000000e+00> : vector<16x128xf32>
    %2 = tpu.matmul %0, %1, %cst {dimension_numbers = #tpu.dot_dimension_numbers<[1], [0], [0], [1], [0, 0, 1, 1], [], []>} : vector<16x128xbf16>, vector<128x128xbf16>, vector<16x128xf32> -> vector<16x128xf32>
    %c0_3 = arith.constant 0 : index
    %c0_4 = arith.constant 0 : index
    %3 = vector.load %arg4[%c0_3, %c0_4] : memref<1x128xf32, #tpu.memory_space<vmem>>, vector<1x128xf32>
    %4 = vector.broadcast %3 : vector<1x128xf32> to vector<16x128xf32>
    %5 = arith.addf %2, %4 : vector<16x128xf32>
    %cst_5 = arith.constant 0.707106769 : f32
    %6 = vector.broadcast %cst_5 : f32 to vector<16x128xf32>
    %7 = arith.mulf %5, %6 : vector<16x128xf32>
    %8 = math.absf %7 : vector<16x128xf32>
    %cst_6 = arith.constant 0.327591091 : f32
    %9 = vector.broadcast %cst_6 : f32 to vector<16x128xf32>
    %10 = arith.mulf %9, %8 : vector<16x128xf32>
    %cst_7 = arith.constant 1.000000e+00 : f32
    %11 = vector.broadcast %cst_7 : f32 to vector<16x128xf32>
    %12 = arith.addf %11, %10 : vector<16x128xf32>
    %cst_8 = arith.constant 1.000000e+00 : f32
    %13 = vector.broadcast %cst_8 : f32 to vector<16x128xf32>
    %14 = arith.divf %13, %12 : vector<16x128xf32>
    %cst_9 = arith.constant 1.06140542 : f32
    %15 = vector.broadcast %cst_9 : f32 to vector<16x128xf32>
    %16 = arith.mulf %14, %15 : vector<16x128xf32>
    %cst_10 = arith.constant -1.45315206 : f32
    %17 = vector.broadcast %cst_10 : f32 to vector<16x128xf32>
    %18 = arith.addf %17, %16 : vector<16x128xf32>
    %19 = arith.mulf %14, %18 : vector<16x128xf32>
    %cst_11 = arith.constant 1.42141378 : f32
    %20 = vector.broadcast %cst_11 : f32 to vector<16x128xf32>
    %21 = arith.addf %20, %19 : vector<16x128xf32>
    %22 = arith.mulf %14, %21 : vector<16x128xf32>
    %cst_12 = arith.constant -0.284496725 : f32
    %23 = vector.broadcast %cst_12 : f32 to vector<16x128xf32>
    %24 = arith.addf %23, %22 : vector<16x128xf32>
    %25 = arith.mulf %14, %24 : vector<16x128xf32>
    %cst_13 = arith.constant 0.254829586 : f32
    %26 = vector.broadcast %cst_13 : f32 to vector<16x128xf32>
    %27 = arith.addf %26, %25 : vector<16x128xf32>
    %28 = arith.mulf %14, %27 : vector<16x128xf32>
    %cst_14 = arith.constant 0.000000e+00 : f32
    %29 = vector.broadcast %cst_14 : f32 to vector<16x128xf32>
    %30 = arith.subf %29, %8 : vector<16x128xf32>
    %31 = arith.mulf %30, %8 : vector<16x128xf32>
    %32 = math.exp %31 : vector<16x128xf32>
    %33 = arith.mulf %28, %32 : vector<16x128xf32>
    %cst_15 = arith.constant 1.000000e+00 : f32
    %34 = vector.broadcast %cst_15 : f32 to vector<16x128xf32>
    %35 = arith.subf %34, %33 : vector<16x128xf32>
    %cst_16 = arith.constant 0.000000e+00 : f32
    %36 = vector.broadcast %cst_16 : f32 to vector<16x128xf32>
    %37 = arith.cmpf oge, %7, %36 : vector<16x128xf32>
    %cst_17 = arith.constant 0.000000e+00 : f32
    %38 = vector.broadcast %cst_17 : f32 to vector<16x128xf32>
    %39 = arith.subf %38, %35 : vector<16x128xf32>
    %40 = arith.select %37, %35, %39 : vector<16x128xi1>, vector<16x128xf32>
    %cst_18 = arith.constant 5.000000e-01 : f32
    %41 = vector.broadcast %cst_18 : f32 to vector<16x128xf32>
    %42 = arith.mulf %41, %5 : vector<16x128xf32>
    %cst_19 = arith.constant 1.000000e+00 : f32
    %43 = vector.broadcast %cst_19 : f32 to vector<16x128xf32>
    %44 = arith.addf %43, %40 : vector<16x128xf32>
    %45 = arith.mulf %42, %44 : vector<16x128xf32>
    %c0_20 = arith.constant 0 : index
    %c0_21 = arith.constant 0 : index
    %46 = vector.load %arg5[%c0_20, %c0_21] : memref<16x128xf32, #tpu.memory_space<vmem>>, vector<16x128xf32>
    tpu.vector_store %arg5[%c0_20, %c0_21], %45 {strides = array<i32>} : memref<16x128xf32, #tpu.memory_space<vmem>>, vector<16x128xf32>,
    return
  }
  func.func @transform_0(%arg0: i32, %arg1: i32) -> (i32, i32) {
    %c0_i32 = arith.constant 0 : i32
    %c0_i32_0 = arith.constant 0 : i32
    return %arg0, %c0_i32 : i32, i32
  }
  func.func @transform_1(%arg0: i32, %arg1: i32) -> (i32, i32) {
    %c0_i32 = arith.constant 0 : i32
    %c0_i32_0 = arith.constant 0 : i32
    return %c0_i32, %arg1 : i32, i32
  }
  func.func @transform_2(%arg0: i32, %arg1: i32) -> (i32, i32) {
    %c0_i32 = arith.constant 0 : i32
    %c0_i32_0 = arith.constant 0 : i32
    return %c0_i32, %arg1 : i32, i32
  }
  func.func @transform_3(%arg0: i32, %arg1: i32) -> (i32, i32) {
    %c0_i32 = arith.constant 0 : i32
    return %arg0, %arg1 : i32, i32
  }
}

</mosaic_0001>

<llo_original>
// kernel: tpu_custom_call.1
$region0: #{tpu_custom_call.1}
  #allocation0 [shape = 'u32[]', space=smem, size = 0x4, offset = 0x4, fixed_abs, tag = 'smem constant byte address 0x4 - core index']
  #allocation1 [shape = 'u32[144,128]{1,0:T(1,128)}', space=vmem, size = 0x12000, scoped, tag = 'internal scratch']
  %s0 = inlined_call_operand.hbm [shape: bf16[16,128], index: 0, kind: input, shape index: {}]
  %s1 = inlined_call_operand.hbm [shape: bf16[128,128], index: 1, kind: input, shape index: {}]
  %s2 = inlined_call_operand.vmem [shape: f32[1,128], index: 2, kind: input, shape index: {}]
  %s3 = inlined_call_operand.hbm [shape: f32[16,128], index: 3, kind: output, shape index: {}]
  %s4 = sld [smem:[#allocation0]]
  $region30: #{tpu_custom_call.1} parent=0
    _
  %s6 = ssub.s32 1, %s4
  %s7 = scalar_select 0, %s6, %s4
  $region1: #{tpu_custom_call.1} parent=0
    #allocation2 [shape = 'u8[4096]{0}', space=vmem, size = 0x1000, scoped, tag = 'input window, operand 0, single buffered']
    #allocation3 [shape = 's32[1]{0}', space=sflag, size = 0x4, scoped, tag = 'scoped memory for tpu_custom_call.1']
    #allocation4 [shape = 's32[1]{0}', space=sflag, size = 0x4, scoped, tag = 'scoped memory for tpu_custom_call.1']
    #allocation5 [shape = 'u8[32768]{0}', space=vmem, size = 0x8000, scoped, tag = 'input window, operand 1, single buffered']
    #allocation6 [shape = 's32[1]{0}', space=sflag, size = 0x4, scoped, tag = 'scoped memory for tpu_custom_call.1']
    #allocation7 [shape = 'u8[8192]{0}', space=vmem, size = 0x2000, scoped, tag = 'output window, operand 0, single buffered']
    %8 = vsyncpa [#allocation3], 0
    %9 = vsyncpa [#allocation6], 0
    %10 = vsyncpa [#allocation4], 0
    // Predicated region
    $region2: #{tpu_custom_call.1} parent=1 // pred_check
      _
    $region3: #{tpu_custom_call.1} parent=1 // pred_check_branch
      %12 = sbr.rel (0) target = $region5
    $region4: #{tpu_custom_call.1} parent=1 // pred_region
      %s14 = ssub.s32 128, 128
      %15 = vsyncadd [#allocation3], %s14
      %s16 = sshll.u32 [#allocation2], 4
      %s17 = int_to_ptr.vmem [resolvable:$true] %s16
      %22 = dma.hbm_to_vmem [thread:$0]  %s0, 128, %s17, [#allocation3], 64, 64, 4
    $region5: #{tpu_custom_call.1} parent=1 // pred_fallthru
      _
    // Predicated region
    $region6: #{tpu_custom_call.1} parent=1 // pred_check
      _
    $region7: #{tpu_custom_call.1} parent=1 // pred_check_branch
      %24 = sbr.rel (0) target = $region9
    $region8: #{tpu_custom_call.1} parent=1 // pred_region
      %s26 = ssub.s32 1024, 1024
      %27 = vsyncadd [#allocation6], %s26
      %s28 = sshll.u32 [#allocation5], 4
      %s29 = int_to_ptr.vmem [resolvable:$true] %s28
      %34 = dma.hbm_to_vmem [thread:$0]  %s1, 1024, %s29, [#allocation6], 64, 64, 4
    $region9: #{tpu_custom_call.1} parent=1 // pred_fallthru
      _
    // Predicated region
    $region10: #{tpu_custom_call.1} parent=1 // pred_check
      _
    $region11: #{tpu_custom_call.1} parent=1 // pred_check_branch
      %36 = sbr.rel (0) target = $region13
    $region12: #{tpu_custom_call.1} parent=1 // pred_region
      _
    $region13: #{tpu_custom_call.1} parent=1 // pred_fallthru
      _
    // Predicated region
    $region14: #{tpu_custom_call.1} parent=1 // pred_check
      _
    $region15: #{tpu_custom_call.1} parent=1 // pred_check_branch
      %38 = sbr.rel (0) target = $region17
    $region16: #{tpu_custom_call.1} parent=1 // pred_region
      %39 = dma.done [#allocation3], 128
    $region17: #{tpu_custom_call.1} parent=1 // pred_fallthru
      _
    // Predicated region
    $region18: #{tpu_custom_call.1} parent=1 // pred_check
      _
    $region19: #{tpu_custom_call.1} parent=1 // pred_check_branch
      %41 = sbr.rel (0) target = $region21
    $region20: #{tpu_custom_call.1} parent=1 // pred_region
      %42 = dma.done [#allocation6], 1024
    $region21: #{tpu_custom_call.1} parent=1 // pred_fallthru
      _
    %v44 = vld [vmem:[#allocation2] sm:$0xf]
    %v45 = vld [vmem:[#allocation2 + $0x4] sm:$0xf]
    %v46 = vld [vmem:[#allocation5] sm:$0xf]
    %v47 = vld [vmem:[#allocation5 + $0x4] sm:$0xf]
    %v48 = vld [vmem:[#allocation5 + $0x8] sm:$0xf]
    %v49 = vld [vmem:[#allocation5 + $0xc] sm:$0xf]
    %v50 = vld [vmem:[#allocation5 + $0x10] sm:$0xf]
    %v51 = vld [vmem:[#allocation5 + $0x14] sm:$0xf]
    %v52 = vld [vmem:[#allocation5 + $0x18] sm:$0xf]
    %v53 = vld [vmem:[#allocation5 + $0x1c] sm:$0xf]
    %v54 = vld [vmem:[#allocation5 + $0x20] sm:$0xf]
    %v55 = vld [vmem:[#allocation5 + $0x24] sm:$0xf]
    %v56 = vld [vmem:[#allocation5 + $0x28] sm:$0xf]
    %v57 = vld [vmem:[#allocation5 + $0x2c] sm:$0xf]
    %v58 = vld [vmem:[#allocation5 + $0x30] sm:$0xf]
    %v59 = vld [vmem:[#allocation5 + $0x34] sm:$0xf]
    %v60 = vld [vmem:[#allocation5 + $0x38] sm:$0xf]
    %v61 = vld [vmem:[#allocation5 + $0x3c] sm:$0xf]
    %v62 = vld [vmem:[%s2] sm:$0x1]
    %v64 = vlaneseq
    %v65 = vshrl.u32 %v64, 7
    %v66 = vsub.s32 0, %v65
    %v67 = vrot.slane %v62, %v66
    %v71 = vunpack.c.l.b16 %v44
    %v72 = vunpack.c.l.b16 %v45
    %v73 = vpack.c.b16 %v72, %v71
    %v91 = vunpack.c.l.b16 %v46
    %v92 = vunpack.c.l.b16 %v47
    %v93 = vunpack.c.l.b16 %v48
    %v94 = vunpack.c.l.b16 %v49
    %v95 = vunpack.c.l.b16 %v50
    %v96 = vunpack.c.l.b16 %v51
    %v97 = vunpack.c.l.b16 %v52
    %v98 = vunpack.c.l.b16 %v53
    %v99 = vunpack.c.l.b16 %v54
    %v100 = vunpack.c.l.b16 %v55
    %v101 = vunpack.c.l.b16 %v56
    %v102 = vunpack.c.l.b16 %v57
    %v103 = vunpack.c.l.b16 %v58
    %v104 = vunpack.c.l.b16 %v59
    %v105 = vunpack.c.l.b16 %v60
    %v106 = vunpack.c.l.b16 %v61
    %v107 = vpack.c.b16 %v92, %v91
    %v108 = vpack.c.b16 %v94, %v93
    %v109 = vpack.c.b16 %v96, %v95
    %v110 = vpack.c.b16 %v98, %v97
    %v111 = vpack.c.b16 %v100, %v99
    %v112 = vpack.c.b16 %v102, %v101
    %v113 = vpack.c.b16 %v104, %v103
    %v114 = vpack.c.b16 %v106, %v105
    %123 = vmatprep.subr.bf16.mxu0 0
    %124 = vmatpush1.bf16.msra.mxu0 %v107
    %125 = vmatprep.subr.bf16.mxu0 0
    %126 = vmatpush1.bf16.msra.mxu0 %v108
    %127 = vmatprep.subr.bf16.mxu0 0
    %128 = vmatpush1.bf16.msra.mxu0 %v109
    %129 = vmatprep.subr.bf16.mxu0 0
    %130 = vmatpush1.bf16.msra.mxu0 %v110
    %131 = vmatprep.subr.bf16.mxu0 0
    %132 = vmatpush1.bf16.msra.mxu0 %v111
    %133 = vmatprep.subr.bf16.mxu0 0
    %134 = vmatpush1.bf16.msra.mxu0 %v112
    %135 = vmatprep.subr.bf16.mxu0 0
    %136 = vmatpush1.bf16.msra.mxu0 %v113
    %137 = vmatprep.subr.bf16.mxu0 0
    %138 = vmatpush1.bf16.msra.mxu0 %v114
    %139 = vmatprep.subr.bf16.mxu0 0
    %140 = vmatpush1.bf16.msra.mxu0 0
    %141 = vmatprep.subr.bf16.mxu0 0
    %142 = vmatpush1.bf16.msra.mxu0 0
    %143 = vmatprep.subr.bf16.mxu0 0
    %144 = vmatpush1.bf16.msra.mxu0 0
    %145 = vmatprep.subr.bf16.mxu0 0
    %146 = vmatpush1.bf16.msra.mxu0 0
    %147 = vmatprep.subr.bf16.mxu0 0
    %148 = vmatpush1.bf16.msra.mxu0 0
    %149 = vmatprep.subr.bf16.mxu0 0
    %150 = vmatpush1.bf16.msra.mxu0 0
    %151 = vmatprep.subr.bf16.mxu0 0
    %152 = vmatpush1.bf16.msra.mxu0 0
    %153 = vmatprep.subr.bf16.mxu0 0
    %154 = vmatpush1.bf16.msra.mxu0 0
    %155 = vmatprep.mubr.bf16.mxu0 0
    %156 = vmatmul.mubr.bf16.gmra.mrb[0].mxu0 %v73
    %v157 = vpop.f32.mrb[0].mxu0
    %v158 = vadd.f32 %v67, %v157
    %v159 = vpop.f32.mrb[0].mxu0
    %v160 = vpop.f32.mrb[0].mxu0
    %v161 = vadd.f32 %v67, %v160
    %v162 = vpop.f32.mrb[0].mxu0
    %163 = vdwg.mxu0
    %v164 = vmul.f32 %v158, 0.70710677
    %v165 = vmul.f32 %v161, 0.70710677
    %v166 = vand.u32 2147483647, %v164
    %v167 = vand.u32 2147483647, %v165
    %v168 = vmul.f32 %v166, 0.3275911
    %v169 = vmul.f32 %v167, 0.3275911
    %v170 = vadd.f32 %v168, 1.0
    %v171 = vadd.f32 %v169, 1.0
    %v172 = vrcp.pop %v170
    %v173 = vmul.f32 1.0, %v172
    %v174 = vrcp.pop %v171
    %v175 = vmul.f32 1.0, %v174
    %v176 = vmul.f32 %v173, 1.0614054
    %v177 = vmul.f32 %v175, 1.0614054
    %v178 = vadd.f32 %v176, -1.4531521
    %v179 = vadd.f32 %v177, -1.4531521
    %v180 = vmul.f32 %v173, %v178
    %v181 = vmul.f32 %v175, %v179
    %v182 = vadd.f32 %v180, 1.4214138
    %v183 = vadd.f32 %v181, 1.4214138
    %v184 = vmul.f32 %v173, %v182
    %v185 = vmul.f32 %v175, %v183
    %v186 = vadd.f32 %v184, -0.28449672
    %v187 = vadd.f32 %v185, -0.28449672
    %v188 = vmul.f32 %v173, %v186
    %v189 = vmul.f32 %v175, %v187
    %v190 = vadd.f32 %v188, 0.2548296
    %v191 = vadd.f32 %v189, 0.2548296
    %v192 = vmul.f32 %v173, %v190
    %v193 = vmul.f32 %v175, %v191
    %v194 = vsub.f32 0.0, %v166
    %v195 = vsub.f32 0.0, %v167
    %v196 = vmul.f32 %v194, %v166
    %v197 = vmul.f32 %v195, %v167
    %v198 = vmul.f32 %v196, 1.442695
    %v199 = vpow.pop %v198
    %v200 = vmul.f32 %v197, 1.442695
    %v201 = vpow.pop %v200
    %v202 = vmul.f32 %v192, %v199
    %v203 = vmul.f32 %v193, %v201
    %v204 = vsub.f32 1.0, %v202
    %v205 = vsub.f32 1.0, %v203
    %vm206 = vcmp.ge.f32.partialorder %v164, 0.0
    %vm207 = vcmp.ge.f32.partialorder %v165, 0.0
    %v208 = vsub.f32 0.0, %v204
    %v209 = vsub.f32 0.0, %v205
    %v210 = vsel %vm206, %v204, %v208
    %v211 = vsel %vm207, %v205, %v209
    %v212 = vmul.f32 %v158, 0.5
    %v213 = vmul.f32 %v161, 0.5
    %v214 = vadd.f32 %v210, 1.0
    %v215 = vadd.f32 %v211, 1.0
    %v216 = vmul.f32 %v212, %v214
    %v217 = vmul.f32 %v213, %v215
    %218 = vst [vmem:[#allocation7] sm:$0xff] %v216
    %219 = vst [vmem:[#allocation7 + $0x8] sm:$0xff] %v217
    // Predicated region
    $region22: #{tpu_custom_call.1} parent=1 // pred_check
      _
    $region23: #{tpu_custom_call.1} parent=1 // pred_check_branch
      %221 = sbr.rel (0) target = $region25
    $region24: #{tpu_custom_call.1} parent=1 // pred_region
      %s223 = ssub.s32 256, 256
      %224 = vsyncadd [#allocation4], %s223
      %s225 = sshll.u32 [#allocation7], 4
      %s226 = int_to_ptr.vmem [resolvable:$true] %s225
      %231 = dma.vmem_to_hbm [thread:$0]  %s226, 256, %s3, [#allocation4], 128, 128, 8
    $region25: #{tpu_custom_call.1} parent=1 // pred_fallthru
      _
    // Predicated region
    $region26: #{tpu_custom_call.1} parent=1 // pred_check
      _
    $region27: #{tpu_custom_call.1} parent=1 // pred_check_branch
      %233 = sbr.rel (0) target = $region29
    $region28: #{tpu_custom_call.1} parent=1 // pred_region
      %234 = dma.done [#allocation4], 256
    $region29: #{tpu_custom_call.1} parent=1 // pred_fallthru
      _
    %235 = vsyncpa [#allocation3], 1
    %236 = vsyncpa [#allocation6], 1
    %237 = vsyncpa [#allocation4], 1

</llo_original>
